<compile_context>
chip_gen: v7x
topology: tpu7x:2x2x1
jax: 0.10.0
libtpu: 0.0.40
codegen_flags: <defaults>
</compile_context>

<pallas_src>
import functools

import jax
import jax.numpy as jnp
from jax.experimental import pallas as pl
from jax.experimental.pallas import tpu as pltpu

ALPHA = 0.5
BETA = 0.5


# ---------------------------------------------------------------------------
# Fused Pallas kernel: 3x3 conv (one stacked matmul) + bias + H-boundary blend
# ---------------------------------------------------------------------------
def _conv_bdy_kernel(x_ref, w_ref, b_ref, m_ref, out_ref, *, H, W, NB):
    # x_ref  : (NB, C_in, (H+2)*W + 2)  H-zero-padded, spatially flattened images
    # w_ref  : (C_out, 9*C_in)          tap-stacked weights, column = (dh*3+dw)*C_in + ci
    # b_ref  : (C_out, 1)               bias
    # m_ref  : (9*C_in, H*W)            precomputed 0/1 multiplier (W zero-padding)
    # out_ref: (NB, C_out, H*W)         flattened NCHW output (lane-dense, 256+ lanes)
    hw = H * W
    mask = m_ref[...]

    # Stacked RHS: taps along sublanes (K = 9*C_in), batch along lanes (N = NB*H*W).
    cols = []
    for b in range(NB):
        xf = x_ref[b]                                          # (C_in, (H+2)*W + 2)
        wins = [xf[:, dh * W + dw: dh * W + dw + hw]           # contiguous lane slices
                for dh in range(3) for dw in range(3)]
        cols.append(jnp.concatenate(wins, axis=0) * mask)      # (9*C_in, H*W)
    rhs = cols[0] if NB == 1 else jnp.concatenate(cols, axis=1)

    # One MXU matmul for all taps and all images of the block; bias folded in.
    acc = jnp.dot(w_ref[...], rhs, preferred_element_type=jnp.float32) + b_ref[...]

    # Fused boundary correction + a single unmasked lane-dense store per image.
    for b in range(NB):
        a = acc[:, b * hw:(b + 1) * hw]                        # aligned lane slice
        bdy = ALPHA * a[:, :W] + BETA * a[:, hw - W:]          # (C_out, W)
        out = jnp.concatenate([bdy, a[:, W:hw - W], bdy], axis=1)
        out_ref[b] = out.astype(out_ref.dtype)


# ---------------------------------------------------------------------------
# Wrapper
# ---------------------------------------------------------------------------
def _pick_images_per_step(n, c_in, c_out, flat_len, hw, itemsize):
    # Target ~2 grid steps: keeps both v7x TensorCores busy while amortizing per-step
    # overhead on single-TC v5e/v6e.  Cap the block so double-buffered tiles stay far
    # below the scoped-VMEM limit (worst case v7x).
    per_image = (c_in * flat_len + c_out * hw) * itemsize
    cap = max(1, (8 << 20) // max(per_image, 1))
    for cand in range(min(n, cap), 0, -1):
        if n % cand == 0 and n // cand >= 2:
            return cand
    return 1


def perkernelcorrection2d_forward(x, weight, bias):
    # x: (N, C_in, H, W), weight: (C_out, C_in, 3, 3), bias: (C_out,) -> (N, C_out, H, W)
    n, c_in, h, w = x.shape
    c_out, _, kh, kw = weight.shape
    assert (kh, kw) == (3, 3), "kernel specialized to the module's 3x3 conv layer"
    hw = h * w
    flat_len = (h + 2) * w + 2
    k_stacked = kh * kw * c_in

    # Single cheap pad: flatten spatial dims, zero-pad W+1 on both ends.  Equivalent to
    # zero-padding the H axis by one row per side (plus one extra zero per end so every
    # 3x3 tap window is a contiguous lane slice of the VMEM tile).
    xflat = jnp.pad(x.reshape(n, c_in, hw), ((0, 0), (0, 0), (w + 1, w + 1)))

    # Tap-stacked weights (C_out, 9*C_in), column index = (dh*3 + dw)*C_in + ci.
    w_stacked = weight.transpose(0, 2, 3, 1).reshape(c_out, k_stacked).astype(x.dtype)
    b2 = bias.reshape(c_out, 1).astype(x.dtype)

    # Precomputed 0/1 W-edge mask for the tap-stacked RHS (hoisted off the per-step path).
    col = jnp.arange(hw, dtype=jnp.int32) % w
    not_left = (col != 0).astype(x.dtype)
    not_right = (col != w - 1).astype(x.dtype)
    ones = jnp.ones((hw,), x.dtype)
    rows = []
    for dh in range(3):
        for dw in range(3):
            m = not_left if dw == 0 else (not_right if dw == 2 else ones)
            rows.append(jnp.broadcast_to(m, (c_in, hw)))
    edge_mask = jnp.concatenate(rows, axis=0)                  # (9*C_in, H*W)

    nb = _pick_images_per_step(n, c_in, c_out, flat_len, hw, x.dtype.itemsize)
    steps = n // nb

    kernel = functools.partial(_conv_bdy_kernel, H=h, W=w, NB=nb)

    flops = 2 * n * k_stacked * c_out * hw
    bytes_accessed = x.dtype.itemsize * (
        n * c_in * flat_len + n * c_out * hw
        + edge_mask.size + w_stacked.size + b2.size)

    out = pl.pallas_call(
        kernel,
        out_shape=jax.ShapeDtypeStruct((n, c_out, hw), x.dtype),
        grid=(steps,),
        in_specs=[
            pl.BlockSpec((nb, c_in, flat_len), lambda i: (i, 0, 0)),
            pl.BlockSpec((c_out, k_stacked), lambda i: (0, 0)),
            pl.BlockSpec((c_out, 1), lambda i: (0, 0)),
            pl.BlockSpec((k_stacked, hw), lambda i: (0, 0)),
        ],
        out_specs=pl.BlockSpec((nb, c_out, hw), lambda i: (i, 0, 0)),
        compiler_params=pltpu.CompilerParams(
            dimension_semantics=("parallel",)),
        cost_estimate=pl.CostEstimate(
            flops=flops, transcendentals=0, bytes_accessed=bytes_accessed),
    )(xflat, w_stacked, b2, edge_mask)

    # (N, C_out, H*W) -> NCHW is a free reshape (no transpose, no extra HBM pass).
    return out.reshape(n, c_out, h, w)


# ---------------------------------------------------------------------------
# Pure-JAX reference for verification
# ---------------------------------------------------------------------------
def _reference(x, weight, bias):
    y = jax.lax.conv_general_dilated(
        x, weight, window_strides=(1, 1), padding=((1, 1), (1, 1)),
        dimension_numbers=("NCHW", "OIHW", "NCHW"))
    y = y + bias.reshape(1, -1, 1, 1)
    bdy = ALPHA * y[:, :, 0, :] + BETA * y[:, :, -1, :]
    y = y.at[:, :, 0, :].set(bdy)
    y = y.at[:, :, -1, :].set(bdy)
    return y


if __name__ == "__main__":
    key = jax.random.PRNGKey(0)
    k_x, k_w, k_b = jax.random.split(key, 3)

    C_IN, C_OUT, H, W = 4, 4, 16, 16
    weight = 0.1 * jax.random.normal(k_w, (C_OUT, C_IN, 3, 3), dtype=jnp.float32)
    bias = 0.1 * jax.random.normal(k_b, (C_OUT,), dtype=jnp.float32)
    fwd = jax.jit(perkernelcorrection2d_forward)

    # N=2 exercises one-image-per-step (2 parallel steps); N=4 exercises the
    # batched lane-stacked RHS path (2 images per step).
    for N in (2, 4):
        x = jax.random.normal(k_x, (N, C_IN, H, W), dtype=jnp.float32)
        out = jax.block_until_ready(fwd(x, weight, bias))
        ref = jax.block_until_ready(_reference(x, weight, bias))
        assert out.shape == (N, C_OUT, H, W)
        assert jnp.allclose(out, ref, atol=1e-4, rtol=1e-4), "mismatch vs reference"

    print("KERNEL_OK")
</pallas_src>

<mosaic_0001>
module attributes {stable_mosaic.version = 11 : i64} {
  func.func @_conv_bdy_kernel(%arg0: i32, %arg1: memref<1x4x290xf32, #tpu.memory_space<vmem>>, %arg2: memref<4x36xf32, #tpu.memory_space<vmem>>, %arg3: memref<4x1xf32, #tpu.memory_space<vmem>>, %arg4: memref<36x256xf32, #tpu.memory_space<vmem>>, %arg5: memref<1x4x256xf32, #tpu.memory_space<vmem>>) attributes {dimension_semantics = [#tpu.dimension_semantics<parallel>], iteration_bounds = array<i64: 2>, scalar_prefetch = 0 : i64, scratch_operands = 0 : i64, tpu.core_type = #tpu.core_type<tc>, window_params = [{transform_indices = @transform_0, window_bounds = array<i64: 1, 4, 290>}, {pipeline_mode = #tpu.pipeline_mode<synchronous>, transform_indices = @transform_1, window_bounds = array<i64: 4, 36>}, {pipeline_mode = #tpu.pipeline_mode<synchronous>, transform_indices = @transform_2, window_bounds = array<i64: 4, 1>}, {pipeline_mode = #tpu.pipeline_mode<synchronous>, transform_indices = @transform_3, window_bounds = array<i64: 36, 256>}, {transform_indices = @transform_4, window_bounds = array<i64: 1, 4, 256>}]} {
    %c0 = arith.constant 0 : index
    %c0_0 = arith.constant 0 : index
    %0 = vector.load %arg4[%c0, %c0_0] : memref<36x256xf32, #tpu.memory_space<vmem>>, vector<36x256xf32>
    %c0_1 = arith.constant 0 : index
    %c0_2 = arith.constant 0 : index
    %c0_3 = arith.constant 0 : index
    %1 = vector.load %arg1[%c0_1, %c0_2, %c0_3] : memref<1x4x290xf32, #tpu.memory_space<vmem>>, vector<1x4x290xf32>
    %2 = vector.shape_cast %1 : vector<1x4x290xf32> to vector<4x290xf32>
    %3 = vector.extract_strided_slice %2 {offsets = [0, 0], sizes = [4, 256], strides = [1, 1]} : vector<4x290xf32> to vector<4x256xf32>
    %4 = vector.extract_strided_slice %2 {offsets = [0, 1], sizes = [4, 256], strides = [1, 1]} : vector<4x290xf32> to vector<4x256xf32>
    %5 = vector.extract_strided_slice %2 {offsets = [0, 2], sizes = [4, 256], strides = [1, 1]} : vector<4x290xf32> to vector<4x256xf32>
    %6 = vector.extract_strided_slice %2 {offsets = [0, 16], sizes = [4, 256], strides = [1, 1]} : vector<4x290xf32> to vector<4x256xf32>
    %7 = vector.extract_strided_slice %2 {offsets = [0, 17], sizes = [4, 256], strides = [1, 1]} : vector<4x290xf32> to vector<4x256xf32>
    %8 = vector.extract_strided_slice %2 {offsets = [0, 18], sizes = [4, 256], strides = [1, 1]} : vector<4x290xf32> to vector<4x256xf32>
    %9 = vector.extract_strided_slice %2 {offsets = [0, 32], sizes = [4, 256], strides = [1, 1]} : vector<4x290xf32> to vector<4x256xf32>
    %10 = vector.extract_strided_slice %2 {offsets = [0, 33], sizes = [4, 256], strides = [1, 1]} : vector<4x290xf32> to vector<4x256xf32>
    %11 = vector.extract_strided_slice %2 {offsets = [0, 34], sizes = [4, 256], strides = [1, 1]} : vector<4x290xf32> to vector<4x256xf32>
    %12 = tpu.concatenate %3, %4, %5, %6, %7, %8, %9, %10, %11 in 0 : vector<4x256xf32>, vector<4x256xf32>, vector<4x256xf32>, vector<4x256xf32>, vector<4x256xf32>, vector<4x256xf32>, vector<4x256xf32>, vector<4x256xf32>, vector<4x256xf32> -> vector<36x256xf32>
    %13 = arith.mulf %12, %0 : vector<36x256xf32>
    %c0_4 = arith.constant 0 : index
    %c0_5 = arith.constant 0 : index
    %14 = vector.load %arg2[%c0_4, %c0_5] : memref<4x36xf32, #tpu.memory_space<vmem>>, vector<4x36xf32>
    %cst = arith.constant dense<0.000000e+00> : vector<4x256xf32>
    %15 = tpu.matmul %14, %13, %cst {dimension_numbers = #tpu.dot_dimension_numbers<[1], [0], [0], [1], [0, 0, 1, 1], [], []>} : vector<4x36xf32>, vector<36x256xf32>, vector<4x256xf32> -> vector<4x256xf32>
    %c0_6 = arith.constant 0 : index
    %c0_7 = arith.constant 0 : index
    %16 = vector.load %arg3[%c0_6, %c0_7] : memref<4x1xf32, #tpu.memory_space<vmem>>, vector<4x1xf32>
    %17 = vector.broadcast %16 : vector<4x1xf32> to vector<4x256xf32>
    %18 = arith.addf %15, %17 : vector<4x256xf32>
    %19 = vector.extract_strided_slice %18 {offsets = [0, 0], sizes = [4, 16], strides = [1, 1]} : vector<4x256xf32> to vector<4x16xf32>
    %cst_8 = arith.constant 5.000000e-01 : f32
    %20 = vector.broadcast %cst_8 : f32 to vector<4x16xf32>
    %21 = arith.mulf %20, %19 : vector<4x16xf32>
    %22 = vector.extract_strided_slice %18 {offsets = [0, 240], sizes = [4, 16], strides = [1, 1]} : vector<4x256xf32> to vector<4x16xf32>
    %cst_9 = arith.constant 5.000000e-01 : f32
    %23 = vector.broadcast %cst_9 : f32 to vector<4x16xf32>
    %24 = arith.mulf %23, %22 : vector<4x16xf32>
    %25 = arith.addf %21, %24 : vector<4x16xf32>
    %26 = vector.extract_strided_slice %18 {offsets = [0, 16], sizes = [4, 224], strides = [1, 1]} : vector<4x256xf32> to vector<4x224xf32>
    %27 = tpu.concatenate %25, %26, %25 in 1 : vector<4x16xf32>, vector<4x224xf32>, vector<4x16xf32> -> vector<4x256xf32>
    %c0_10 = arith.constant 0 : index
    %c0_11 = arith.constant 0 : index
    %c0_12 = arith.constant 0 : index
    %28 = vector.load %arg5[%c0_10, %c0_11, %c0_12] : memref<1x4x256xf32, #tpu.memory_space<vmem>>, vector<1x4x256xf32>
    %29 = vector.shape_cast %28 : vector<1x4x256xf32> to vector<4x256xf32>
    %30 = vector.shape_cast %27 : vector<4x256xf32> to vector<1x4x256xf32>
    tpu.vector_store %arg5[%c0_10, %c0_11, %c0_12], %30 {strides = array<i32>} : memref<1x4x256xf32, #tpu.memory_space<vmem>>, vector<1x4x256xf32>,
    return
  }
  func.func @transform_0(%arg0: i32) -> (i32, i32, i32) {
    %c0_i32 = arith.constant 0 : i32
    %c0_i32_0 = arith.constant 0 : i32
    %c0_i32_1 = arith.constant 0 : i32
    return %arg0, %c0_i32, %c0_i32_0 : i32, i32, i32
  }
  func.func @transform_1(%arg0: i32) -> (i32, i32) {
    %c0_i32 = arith.constant 0 : i32
    %c0_i32_0 = arith.constant 0 : i32
    %c0_i32_1 = arith.constant 0 : i32
    return %c0_i32, %c0_i32_0 : i32, i32
  }
  func.func @transform_2(%arg0: i32) -> (i32, i32) {
    %c0_i32 = arith.constant 0 : i32
    %c0_i32_0 = arith.constant 0 : i32
    %c0_i32_1 = arith.constant 0 : i32
    return %c0_i32, %c0_i32_0 : i32, i32
  }
  func.func @transform_3(%arg0: i32) -> (i32, i32) {
    %c0_i32 = arith.constant 0 : i32
    %c0_i32_0 = arith.constant 0 : i32
    %c0_i32_1 = arith.constant 0 : i32
    return %c0_i32, %c0_i32_0 : i32, i32
  }
  func.func @transform_4(%arg0: i32) -> (i32, i32, i32) {
    %c0_i32 = arith.constant 0 : i32
    %c0_i32_0 = arith.constant 0 : i32
    %c0_i32_1 = arith.constant 0 : i32
    return %arg0, %c0_i32, %c0_i32_0 : i32, i32, i32
  }
}

</mosaic_0001>

<llo_original>
// kernel: perkernelcorrection2d_forward.1
$region0: #{perkernelcorrection2d_forward.1}
  #allocation0 [shape = 'u32[]', space=smem, size = 0x4, offset = 0x4, fixed_abs, tag = 'smem constant byte address 0x4 - core index']
  #allocation1 [shape = 'u32[144,128]{1,0:T(1,128)}', space=vmem, size = 0x12000, scoped, tag = 'internal scratch']
  %s0 = inlined_call_operand.vmem [shape: f32[2,4,290], index: 0, kind: input, shape index: {}]
  %s1 = inlined_call_operand.vmem [shape: f32[4,36], index: 1, kind: input, shape index: {}]
  %s2 = inlined_call_operand.vmem [shape: f32[4,1], index: 2, kind: input, shape index: {}]
  %s3 = inlined_call_operand.vmem [shape: f32[36,256], index: 3, kind: input, shape index: {}]
  %s4 = inlined_call_operand.vmem [shape: f32[2,4,256], index: 4, kind: output, shape index: {}]
  %s5 = sld [smem:[#allocation0]]
  $region49: #{perkernelcorrection2d_forward.1} parent=0
    _
  %s7 = ssub.s32 1, %s5
  %s8 = scalar_select 0, %s7, %s5
  loop: start=0, step=1, limit=4
  $region2: #{perkernelcorrection2d_forward.1} parent=0 // loop_pre_header
    _
  $region3: #{perkernelcorrection2d_forward.1} parent=0 // loop_header
    %s10 = sphi 0, %s14
    %p11 = scmp.ge.s32.totalorder %s10, 4
    %s20 = sphi 0, %s22
    %s23 = sphi 0, %s20
    %s24 = sphi 0, %s23
    %s40 = sphi 0, %s24
    %s44 = sphi 0, %s44
    %s46 = sphi 0, %s44
    %s47 = sphi 0, %s46
    %s61 = sphi 0, %s47
    %s65 = sphi 0, %s65
    %s67 = sphi 0, %s65
    %s68 = sphi 0, %s67
    %s82 = sphi 0, %s68
    %s86 = sphi 0, %s86
    %s88 = sphi 0, %s86
    %s89 = sphi 0, %s88
    %s103 = sphi 0, %s89
    %s109 = sphi 0, %s111
    %s112 = sphi 0, %s109
    %s113 = sphi 0, %s112
    %s129 = sphi 0, %s113
  $region4: #{perkernelcorrection2d_forward.1} parent=0 // loop_header_branch
    %13 = sbr.rel (%p11) target = $region8
  $region5: #{perkernelcorrection2d_forward.1} parent=0 // loop_body
    %s15 = ssub.s32 %s10, 1
    %s16 = ssub.s32 %s10, 2
    %s17 = sadd.s32 %s10, 1
    %s18 = ssub.s32 %s10, %s17
    %p19 = scmp.eq.s32.totalorder %s18, 0
    %s21 = sadd.s32 %s20, 1
    %s22 = scalar_select %p19, %s20, %s21
    %p25 = pneg %p19
    %p26 = scmp.eq.s32.totalorder %s10, 1
    %p27 = por %p25, %p26
    %p28 = scmp.ne.s32.totalorder %s20, %s23
    %p29 = scmp.eq.s32.totalorder %s10, 0
    %p30 = por %p28, %p29
    %p31 = scmp.ne.s32.totalorder %s20, %s23
    %p32 = scmp.eq.s32.totalorder %s15, 1
    %p33 = por %p31, %p32
    %p34 = scmp.ne.s32.totalorder %s23, %s24
    %p35 = scmp.eq.s32.totalorder %s15, 0
    %p36 = por %p34, %p35
    %p37 = scmp.ne.s32.totalorder %s23, %s24
    %p38 = scmp.eq.s32.totalorder %s16, 1
    %p39 = por %p37, %p38
    %p41 = scmp.ne.s32.totalorder %s24, %s40
    %p42 = scmp.eq.s32.totalorder %s16, 0
    %p43 = por %p41, %p42
    %s45 = sadd.s32 %s44, 1
    %p48 = scmp.eq.s32.totalorder %s10, 1
    %p49 = scmp.ne.s32.totalorder %s44, %s46
    %p50 = scmp.eq.s32.totalorder %s10, 0
    %p51 = por %p49, %p50
    %p52 = scmp.ne.s32.totalorder %s44, %s46
    %p53 = scmp.eq.s32.totalorder %s15, 1
    %p54 = por %p52, %p53
    %p55 = scmp.ne.s32.totalorder %s46, %s47
    %p56 = scmp.eq.s32.totalorder %s15, 0
    %p57 = por %p55, %p56
    %p58 = scmp.ne.s32.totalorder %s46, %s47
    %p59 = scmp.eq.s32.totalorder %s16, 1
    %p60 = por %p58, %p59
    %p62 = scmp.ne.s32.totalorder %s47, %s61
    %p63 = scmp.eq.s32.totalorder %s16, 0
    %p64 = por %p62, %p63
    %s66 = sadd.s32 %s65, 1
    %p69 = scmp.eq.s32.totalorder %s10, 1
    %p70 = scmp.ne.s32.totalorder %s65, %s67
    %p71 = scmp.eq.s32.totalorder %s10, 0
    %p72 = por %p70, %p71
    %p73 = scmp.ne.s32.totalorder %s65, %s67
    %p74 = scmp.eq.s32.totalorder %s15, 1
    %p75 = por %p73, %p74
    %p76 = scmp.ne.s32.totalorder %s67, %s68
    %p77 = scmp.eq.s32.totalorder %s15, 0
    %p78 = por %p76, %p77
    %p79 = scmp.ne.s32.totalorder %s67, %s68
    %p80 = scmp.eq.s32.totalorder %s16, 1
    %p81 = por %p79, %p80
    %p83 = scmp.ne.s32.totalorder %s68, %s82
    %p84 = scmp.eq.s32.totalorder %s16, 0
    %p85 = por %p83, %p84
    %s87 = sadd.s32 %s86, 1
    %p90 = scmp.eq.s32.totalorder %s10, 1
    %p91 = scmp.ne.s32.totalorder %s86, %s88
    %p92 = scmp.eq.s32.totalorder %s10, 0
    %p93 = por %p91, %p92
    %p94 = scmp.ne.s32.totalorder %s86, %s88
    %p95 = scmp.eq.s32.totalorder %s15, 1
    %p96 = por %p94, %p95
    %p97 = scmp.ne.s32.totalorder %s88, %s89
    %p98 = scmp.eq.s32.totalorder %s15, 0
    %p99 = por %p97, %p98
    %p100 = scmp.ne.s32.totalorder %s88, %s89
    %p101 = scmp.eq.s32.totalorder %s16, 1
    %p102 = por %p100, %p101
    %p104 = scmp.ne.s32.totalorder %s89, %s103
    %p105 = scmp.eq.s32.totalorder %s16, 0
    %p106 = por %p104, %p105
    %s107 = ssub.s32 %s10, %s17
    %p108 = scmp.eq.s32.totalorder %s107, 0
    %s110 = sadd.s32 %s109, 1
    %s111 = scalar_select %p108, %s109, %s110
    %p114 = pneg %p108
    %p115 = scmp.eq.s32.totalorder %s10, 1
    %p116 = por %p114, %p115
    %p117 = scmp.ne.s32.totalorder %s109, %s112
    %p118 = scmp.eq.s32.totalorder %s10, 0
    %p119 = por %p117, %p118
    %p120 = scmp.ne.s32.totalorder %s109, %s112
    %p121 = scmp.eq.s32.totalorder %s15, 1
    %p122 = por %p120, %p121
    %p123 = scmp.ne.s32.totalorder %s112, %s113
    %p124 = scmp.eq.s32.totalorder %s15, 0
    %p125 = por %p123, %p124
    %p126 = scmp.ne.s32.totalorder %s112, %s113
    %p127 = scmp.eq.s32.totalorder %s16, 1
    %p128 = por %p126, %p127
    %p130 = scmp.ne.s32.totalorder %s113, %s129
    %p131 = scmp.eq.s32.totalorder %s16, 0
    %p132 = por %p130, %p131
    %p133 = scmp.le.s32.totalorder 1, %s10
    %p134 = scmp.lt.s32.totalorder %s10, 3
    %p135 = pnand %p133, %p134
    %p136 = pneg %p135
    // Predicated region
    $region9: #{perkernelcorrection2d_forward.1} parent=5 // pred_check
      _
    $region10: #{perkernelcorrection2d_forward.1} parent=5 // pred_check_branch
      %138 = sbr.rel (%p135) target = $region12
    $region11: #{perkernelcorrection2d_forward.1} parent=5 // pred_region
      %s139 = ssub.s32 %s10, 1
      // Predicated region
      $region13: #{perkernelcorrection2d_forward.1} parent=11 // pred_check
        %p140 = pneg %p57
      $region14: #{perkernelcorrection2d_forward.1} parent=11 // pred_check_branch
        %142 = sbr.rel (%p140) target = $region16
      $region15: #{perkernelcorrection2d_forward.1} parent=11 // pred_region
        _
      $region16: #{perkernelcorrection2d_forward.1} parent=11 // pred_fallthru
        _
      // Predicated region
      $region17: #{perkernelcorrection2d_forward.1} parent=11 // pred_check
        %p143 = pneg %p78
      $region18: #{perkernelcorrection2d_forward.1} parent=11 // pred_check_branch
        %145 = sbr.rel (%p143) target = $region20
      $region19: #{perkernelcorrection2d_forward.1} parent=11 // pred_region
        _
      $region20: #{perkernelcorrection2d_forward.1} parent=11 // pred_fallthru
        _
      // Predicated region
      $region21: #{perkernelcorrection2d_forward.1} parent=11 // pred_check
        %p146 = pneg %p99
      $region22: #{perkernelcorrection2d_forward.1} parent=11 // pred_check_branch
        %148 = sbr.rel (%p146) target = $region24
      $region23: #{perkernelcorrection2d_forward.1} parent=11 // pred_region
        _
      $region24: #{perkernelcorrection2d_forward.1} parent=11 // pred_fallthru
        _
    $region12: #{perkernelcorrection2d_forward.1} parent=5 // pred_fallthru
      _
    %p149 = scmp.lt.s32.totalorder %s10, 2
    // Predicated region
    $region25: #{perkernelcorrection2d_forward.1} parent=5 // pred_check
      %p150 = pneg %p149
    $region26: #{perkernelcorrection2d_forward.1} parent=5 // pred_check_branch
      %152 = sbr.rel (%p150) target = $region28
    $region27: #{perkernelcorrection2d_forward.1} parent=5 // pred_region
      // Predicated region
      $region29: #{perkernelcorrection2d_forward.1} parent=27 // pred_check
        %p153 = pneg %p30
      $region30: #{perkernelcorrection2d_forward.1} parent=27 // pred_check_branch
        %155 = sbr.rel (%p153) target = $region32
      $region31: #{perkernelcorrection2d_forward.1} parent=27 // pred_region
        %p156 = scmp.lt.s32.totalorder %s10, 1
        %s157 = scalar_select %p156, %s10, 1
        %s158 = smul.addr %s157, 3
        %s159 = smul.addr %s158, 4
        %s160 = scalar_lea.vmem %s0, %s159
      $region32: #{perkernelcorrection2d_forward.1} parent=27 // pred_fallthru
        _
    $region28: #{perkernelcorrection2d_forward.1} parent=5 // pred_fallthru
      _
    %p161 = scmp.le.s32.totalorder 1, %s10
    %p162 = scmp.lt.s32.totalorder %s10, 3
    %p163 = pnand %p161, %p162
    %p164 = pneg %p163
    // Predicated region
    $region33: #{perkernelcorrection2d_forward.1} parent=5 // pred_check
      _
    $region34: #{perkernelcorrection2d_forward.1} parent=5 // pred_check_branch
      %166 = sbr.rel (%p163) target = $region36
    $region35: #{perkernelcorrection2d_forward.1} parent=5 // pred_region
      %s167 = ssub.s32 %s10, 1
      %p168 = scmp.lt.s32.totalorder %s15, 1
      %s169 = scalar_select %p168, %s15, 1
      %s170 = smul.addr %s169, 3
      %s171 = smul.addr %s170, 4
      %s172 = scalar_lea.vmem %s0, %s171
      %p173 = pneg %p36
      %p174 = pneg %p33
      %p175 = pneg %p57
      %p176 = pneg %p54
      %p177 = pneg %p78
      %p178 = pneg %p75
      %p179 = pneg %p99
      %p180 = pneg %p96
      %p181 = pneg %p125
      %p182 = pneg %p122
      %p183 = scmp.lt.s32.totalorder %s15, 1
      %s184 = scalar_select %p183, %s15, 1
      %s185 = smul.addr %s184, 2
      %s186 = smul.addr %s185, 4
      %s187 = scalar_lea.vmem %s4, %s186
      %p188 = scmp.lt.s32.totalorder %s15, 1
      %s189 = scalar_select %p188, %s15, 1
      %s190 = smul.addr %s189, 3
      %s191 = smul.addr %s190, 4
      %s192 = scalar_lea.vmem %s0, %s191
      %p193 = scmp.lt.s32.totalorder %s15, 1
      %s194 = scalar_select %p193, %s15, 1
      %s195 = smul.addr %s194, 2
      %s196 = smul.addr %s195, 4
      %s197 = scalar_lea.vmem %s4, %s196
      %v198 = vld [vmem:[%s3] sm:$0xff]
      %v199 = vld [vmem:[%s3 + $0x8] sm:$0xff]
      %v200 = vld [vmem:[%s3 + $0x10] sm:$0xff]
      %v201 = vld [vmem:[%s3 + $0x18] sm:$0xff]
      %v202 = vld [vmem:[%s3 + $0x20] sm:$0xff]
      %v203 = vld [vmem:[%s3 + $0x28] sm:$0xff]
      %v204 = vld [vmem:[%s3 + $0x30] sm:$0xff]
      %v205 = vld [vmem:[%s3 + $0x38] sm:$0xff]
      %v206 = vld [vmem:[%s3 + $0x40] sm:$0xf]
      %v207 = vld [vmem:[%s3 + $0x48] sm:$0xf]
      %v208 = vld [vmem:[%s192] sm:$0xff]
      %v209 = vld [vmem:[%s192 + $0x8] sm:$0xf]
      %v211 = vcombine.high %v208, %v208
      %v214 = vcombine.low %v208, %v208
      %v215 = vcombine.low %v209, %v209
      %216 = vrot.lane.b32.xlu0 %v214, 127
      %v217 = vpop.permute.xlu0 %216
      %218 = vrot.lane.b32.xlu0 %v208, 127
      %v219 = vpop.permute.xlu0 %218
      %220 = vrot.lane.b32.xlu0 %v215, 127
      %v221 = vpop.permute.xlu0 %220
      %vm222 = vcmask 1039360
      %v223 = vsel %vm222, %v217, %v219
      %v224 = vsel %vm222, %v219, %v221
      %227 = vrot.lane.b32.xlu0 %v208, 126
      %v228 = vpop.permute.xlu0 %227
      %229 = vrot.lane.b32.xlu0 %v211, 126
      %v230 = vpop.permute.xlu0 %229
      %231 = vrot.lane.b32.xlu0 %v209, 126
      %v232 = vpop.permute.xlu0 %231
      %vm233 = vcmask 1031168
      %v234 = vsel %vm233, %v228, %v230
      %v235 = vsel %vm233, %v230, %v232
      %238 = vrot.lane.b32.xlu0 %v214, 112
      %v239 = vpop.permute.xlu0 %238
      %240 = vrot.lane.b32.xlu0 %v208, 112
      %v241 = vpop.permute.xlu0 %240
      %242 = vrot.lane.b32.xlu0 %v215, 112
      %v243 = vpop.permute.xlu0 %242
      %vm244 = vcmask 916480
      %v245 = vsel %vm244, %v239, %v241
      %v246 = vsel %vm244, %v241, %v243
      %249 = vrot.lane.b32.xlu0 %v208, 111
      %v250 = vpop.permute.xlu0 %249
      %251 = vrot.lane.b32.xlu0 %v211, 111
      %v252 = vpop.permute.xlu0 %251
      %253 = vrot.lane.b32.xlu0 %v209, 111
      %v254 = vpop.permute.xlu0 %253
      %vm255 = vcmask 908288
      %v256 = vsel %vm255, %v250, %v252
      %v257 = vsel %vm255, %v252, %v254
      %260 = vrot.lane.b32.xlu0 %v214, 110
      %v261 = vpop.permute.xlu0 %260
      %262 = vrot.lane.b32.xlu0 %v208, 110
      %v263 = vpop.permute.xlu0 %262
      %264 = vrot.lane.b32.xlu0 %v215, 110
      %v265 = vpop.permute.xlu0 %264
      %vm266 = vcmask 900096
      %v267 = vsel %vm266, %v261, %v263
      %v268 = vsel %vm266, %v263, %v265
      %271 = vrot.lane.b32.xlu0 %v208, 96
      %v272 = vpop.permute.xlu0 %271
      %273 = vrot.lane.b32.xlu0 %v211, 96
      %v274 = vpop.permute.xlu0 %273
      %275 = vrot.lane.b32.xlu0 %v209, 96
      %v276 = vpop.permute.xlu0 %275
      %vm277 = vcmask 785408
      %v278 = vsel %vm277, %v272, %v274
      %v279 = vsel %vm277, %v274, %v276
      %282 = vrot.lane.b32.xlu0 %v214, 95
      %v283 = vpop.permute.xlu0 %282
      %284 = vrot.lane.b32.xlu0 %v208, 95
      %v285 = vpop.permute.xlu0 %284
      %286 = vrot.lane.b32.xlu0 %v215, 95
      %v287 = vpop.permute.xlu0 %286
      %vm288 = vcmask 777216
      %v289 = vsel %vm288, %v283, %v285
      %v290 = vsel %vm288, %v285, %v287
      %293 = vrot.lane.b32.xlu0 %v208, 94
      %v294 = vpop.permute.xlu0 %293
      %295 = vrot.lane.b32.xlu0 %v211, 94
      %v296 = vpop.permute.xlu0 %295
      %297 = vrot.lane.b32.xlu0 %v209, 94
      %v298 = vpop.permute.xlu0 %297
      %vm299 = vcmask 769024
      %v300 = vsel %vm299, %v294, %v296
      %v301 = vsel %vm299, %v296, %v298
      %vm304 = vcmask 1043456
      %v305 = vsel %vm304, %v208, %v223
      %v306 = vsel %vm304, %v211, %v224
      %v307 = vsel %vm304, %v234, %v245
      %v308 = vsel %vm304, %v235, %v246
      %v309 = vsel %vm304, %v256, %v267
      %v310 = vsel %vm304, %v257, %v268
      %v311 = vsel %vm304, %v278, %v289
      %v312 = vsel %vm304, %v279, %v290
      %v313 = vmul.f32 %v305, %v198
      %v314 = vmul.f32 %v306, %v199
      %v315 = vmul.f32 %v307, %v200
      %v316 = vmul.f32 %v308, %v201
      %v317 = vmul.f32 %v309, %v202
      %v318 = vmul.f32 %v310, %v203
      %v319 = vmul.f32 %v311, %v204
      %v320 = vmul.f32 %v312, %v205
      %v321 = vmul.f32 %v300, %v206
      %v322 = vmul.f32 %v301, %v207
      %v323 = vld [vmem:[%s1] sm:$0xf]
      %v324 = vld [vmem:[%s2] sm:$0xf]
      %326 = vset.pattern.permute.xlu0 0
      %327 = vperm.xlu0 %326, %v324
      %v328 = vpop.permute.xlu0 %327
      %vm330 = vcmask 293888
      %v332 = vsel %vm330, %v323, 0
      %v335 = vsel %vm304, %v321, 0
      %v338 = vsel %vm304, %v322, 0
      %340 = vmatprep.subr.mxu0 %v314
      %341 = vmatpush1.msra.mxu0 %v313
      %342 = vmatprep.subr.mxu0 %v316
      %343 = vmatpush1.msra.mxu0 %v315
      %344 = vmatprep.subr.mxu0 %v318
      %345 = vmatpush1.msra.mxu0 %v317
      %346 = vmatprep.subr.mxu0 %v320
      %347 = vmatpush1.msra.mxu0 %v319
      %348 = vmatprep.subr.mxu0 %v338
      %349 = vmatpush1.msra.mxu0 %v335
      %350 = vmatprep.subr.mxu0 0.0
      %351 = vmatpush1.msra.mxu0 0.0
      %352 = vmatprep.subr.mxu0 0.0
      %353 = vmatpush1.msra.mxu0 0.0
      %354 = vmatprep.subr.mxu0 0.0
      %355 = vmatpush1.msra.mxu0 0.0
      %356 = vmatprep.subr.mxu0 0.0
      %357 = vmatpush1.msra.mxu0 0.0
      %358 = vmatprep.subr.mxu0 0.0
      %359 = vmatpush1.msra.mxu0 0.0
      %360 = vmatprep.subr.mxu0 0.0
      %361 = vmatpush1.msra.mxu0 0.0
      %362 = vmatprep.subr.mxu0 0.0
      %363 = vmatpush1.msra.mxu0 0.0
      %364 = vmatprep.subr.mxu0 0.0
      %365 = vmatpush1.msra.mxu0 0.0
      %366 = vmatprep.subr.mxu0 0.0
      %367 = vmatpush1.msra.mxu0 0.0
      %368 = vmatprep.subr.mxu0 0.0
      %369 = vmatpush1.msra.mxu0 0.0
      %370 = vmatprep.subr.mxu0 0.0
      %371 = vmatpush1.msra.mxu0 0.0
      %372 = vmatprep.subr.mxu0 0.0
      %373 = vmatpush1.msra.mxu0 0.0
      %374 = vmatprep.subr.mxu0 0.0
      %375 = vmatpush1.msra.mxu0 0.0
      %376 = vmatprep.subr.mxu0 0.0
      %377 = vmatpush1.msra.mxu0 0.0
      %378 = vmatprep.subr.mxu0 0.0
      %379 = vmatpush1.msra.mxu0 0.0
      %380 = vmatprep.subr.mxu0 0.0
      %381 = vmatpush1.msra.mxu0 0.0
      %382 = vmatprep.subr.mxu0 0.0
      %383 = vmatpush1.msra.mxu0 0.0
      %384 = vmatprep.subr.mxu0 0.0
      %385 = vmatpush1.msra.mxu0 0.0
      %386 = vmatprep.subr.mxu0 0.0
      %387 = vmatpush1.msra.mxu0 0.0
      %388 = vmatprep.subr.mxu0 0.0
      %389 = vmatpush1.msra.mxu0 0.0
      %390 = vmatprep.subr.mxu0 0.0
      %391 = vmatpush1.msra.mxu0 0.0
      %392 = vmatprep.subr.mxu0 0.0
      %393 = vmatpush1.msra.mxu0 0.0
      %394 = vmatprep.subr.mxu0 0.0
      %395 = vmatpush1.msra.mxu0 0.0
      %396 = vmatprep.subr.mxu0 0.0
      %397 = vmatpush1.msra.mxu0 0.0
      %398 = vmatprep.subr.mxu0 0.0
      %399 = vmatpush1.msra.mxu0 0.0
      %400 = vmatprep.subr.mxu0 0.0
      %401 = vmatpush1.msra.mxu0 0.0
      %402 = vmatprep.subr.mxu0 0.0
      %403 = vmatpush1.msra.mxu0 0.0
      %404 = vmatprep.mubr.f32.mxu0 0.0
      %405 = vmatmul.mubr.f32.gmra.mrb[0].mxu0 %v332
      %v406 = vpop.f32.mrb[0].mxu0
      %v407 = vadd.f32 %v328, %v406
      %v408 = vpop.f32.mrb[0].mxu0
      %v409 = vadd.f32 %v328, %v408
      %410 = vdwg.mxu0
      %v411 = vmul.f32 %v407, 0.5
      %v412 = vmul.f32 %v409, 0.5
      %414 = vrot.lane.b32.xlu0 %v412, 16
      %v415 = vpop.permute.xlu0 %414
      %v417 = vadd.f32 %v411, %v415
      %419 = vrot.lane.b32.xlu0 %v417, 112
      %v420 = vpop.permute.xlu0 %419
      %vm422 = vcmask 130048
      %v423 = vsel %vm422, %v417, %v407
      %v424 = vsel %vm244, %v409, %v420
      %v427 = vcombine.low %v423, %v424
      %429 = vst [vmem:[%s197] sm:$0xff] %v427
      %p430 = scmp.lt.s32.totalorder %s15, 1
      %s431 = scalar_select %p430, %s15, 1
      %s432 = smul.addr %s431, 2
      %s433 = smul.addr %s432, 4
      %s434 = scalar_lea.vmem %s4, %s433
      // Predicated region
      $region37: #{perkernelcorrection2d_forward.1} parent=35 // pred_check
        %p435 = pneg %p122
      $region38: #{perkernelcorrection2d_forward.1} parent=35 // pred_check_branch
        %437 = sbr.rel (%p435) target = $region40
      $region39: #{perkernelcorrection2d_forward.1} parent=35 // pred_region
        _
      $region40: #{perkernelcorrection2d_forward.1} parent=35 // pred_fallthru
        _
    $region36: #{perkernelcorrection2d_forward.1} parent=5 // pred_fallthru
      _
    %p438 = scmp.le.s32.totalorder 2, %s10
    // Predicated region
    $region41: #{perkernelcorrection2d_forward.1} parent=5 // pred_check
      %p439 = pneg %p438
    $region42: #{perkernelcorrection2d_forward.1} parent=5 // pred_check_branch
      %441 = sbr.rel (%p439) target = $region44
    $region43: #{perkernelcorrection2d_forward.1} parent=5 // pred_region
      %s442 = ssub.s32 %s10, 2
      // Predicated region
      $region45: #{perkernelcorrection2d_forward.1} parent=43 // pred_check
        %p443 = pneg %p128
      $region46: #{perkernelcorrection2d_forward.1} parent=43 // pred_check_branch
        %445 = sbr.rel (%p443) target = $region48
      $region47: #{perkernelcorrection2d_forward.1} parent=43 // pred_region
        %p446 = scmp.lt.s32.totalorder %s16, 1
        %s447 = scalar_select %p446, %s16, 1
        %s448 = smul.addr %s447, 2
        %s449 = smul.addr %s448, 4
        %s450 = scalar_lea.vmem %s4, %s449
      $region48: #{perkernelcorrection2d_forward.1} parent=43 // pred_fallthru
        _
    $region44: #{perkernelcorrection2d_forward.1} parent=5 // pred_fallthru
      _
  $region6: #{perkernelcorrection2d_forward.1} parent=0 // loop_footer
    %s14 = sadd.s32 1, %s10
  $region7: #{perkernelcorrection2d_forward.1} parent=0 // loop_footer_branch
    %9 = sbr.rel target = $region3
  $region8: #{perkernelcorrection2d_forward.1} parent=0 // loop_exit
    _

</llo_original>
